<compile_context>
chip_gen: v7x
topology: tpu7x:2x2x1
jax: 0.10.0
libtpu: 0.0.40
codegen_flags: <defaults>
</compile_context>

<pallas_src>
import functools

import numpy as np
import jax
import jax.numpy as jnp
from jax import lax
from jax.experimental import pallas as pl
from jax.experimental.pallas import tpu as pltpu


# --------------------------------------------------------------------------- #
# Kernel
# --------------------------------------------------------------------------- #
def _loss_kernel(x_ref, r_ref, f_ref, m_ref, out_ref, acc_ref, epi_ref, *,
                 rows_valid, n_full, needs_mask):
    p = pl.program_id(0)                 # parallel part (megacore split on v7x)
    j = pl.program_id(1)                 # sequential row-tile within the part
    tpp = pl.num_programs(1)
    tr, lanes = x_ref.shape
    g = p * tpp + j                      # intended global row-tile index

    # ---- first step of this part: zero accumulator + clustering epilogue ----
    # (f / m are VMEM-resident from step 0; doing the tiny clustering term here
    #  hides it under the first tiles' DMAs instead of serializing at the end.)
    @pl.when(j == 0)
    def _():
        acc_ref[...] = jnp.zeros_like(acc_ref)

        f = f_ref[...].astype(jnp.float32)            # (N, F)
        m = m_ref[...].astype(jnp.float32)            # (K, F)
        n_samp = f.shape[0]
        k_clusters = m.shape[0]

        # exact ||f_i - m_k||^2 (direct form, per the precision concern)
        diff = f[:, None, :] - m[None, :, :]          # (N, K, F)
        d2 = jnp.sum(diff * diff, axis=-1)            # (N, K)
        d = jnp.sqrt(d2)

        # p_{ik} = softmax_k(-||f_i - m_k||^2)
        logits = -d2
        logits = logits - jnp.max(logits, axis=1, keepdims=True)
        pe = jnp.exp(logits)
        prob = pe / jnp.sum(pe, axis=1, keepdims=True)
        intra = jnp.sum(prob * d) / n_samp            # mean_i sum_k p_ik d_ik

        # inter: same weighted norm evaluated at the cluster-centre mean
        mbar = jnp.sum(m, axis=0, keepdims=True) / k_clusters    # (1, F)
        dm = m - mbar                                            # (K, F)
        dm2 = jnp.sum(dm * dm, axis=-1, keepdims=True)           # (K, 1)
        dnorm = jnp.sqrt(dm2)
        lm = -dm2
        lm = lm - jnp.max(lm, axis=0, keepdims=True)
        pm = jnp.exp(lm)
        pm = pm / jnp.sum(pm, axis=0, keepdims=True)
        inter = jnp.sum(pm * dnorm)

        epi_ref[0] = intra
        epi_ref[1] = inter

    # ---- streaming squared error (cast in-kernel; mask only ragged tiles) ---
    e = x_ref[...].astype(jnp.float32) - r_ref[...].astype(jnp.float32)
    sq = e * e
    if needs_mask:
        # steady state: no iota / compare / select in the hot loop
        @pl.when(g < n_full)
        def _():
            acc_ref[...] += sq

        # ragged last tile and clamped duplicate tiles (from the 2-way split)
        @pl.when(g >= n_full)
        def _():
            row = g * tr + lax.broadcasted_iota(jnp.int32, (tr, lanes), 0)
            acc_ref[...] += jnp.where(row < rows_valid, sq, 0.0)
    else:
        acc_ref[...] += sq

    # ---- last step of this part: reduce once, write the part's output row ---
    @pl.when(j == tpp - 1)
    def _():
        partial = jnp.sum(acc_ref[...])               # single deferred reduction
        idx = (lax.broadcasted_iota(jnp.int32, out_ref.shape, 1) * 128
               + lax.broadcasted_iota(jnp.int32, out_ref.shape, 2))
        vals = jnp.where(idx == 0, partial,
               jnp.where(idx == 1, epi_ref[0],
               jnp.where(idx == 2, epi_ref[1], 0.0)))
        out_ref[...] = vals


# --------------------------------------------------------------------------- #
# Wrapper helpers
# --------------------------------------------------------------------------- #
def _vmem_config():
    """Per-generation VMEM budget for the streaming working set + scoped limit."""
    cap = 64 << 20                                    # conservative default (v7x)
    try:
        info = pltpu.get_tpu_info()
        cap = int(getattr(info, "vmem_capacity_bytes", cap)) or cap
    except Exception:
        pass
    tile_budget = min(28 << 20, (cap * 3) // 8)       # ~24 MiB v7x, 28 MiB v5e/v6e
    vmem_limit = max(tile_budget + (8 << 20), min((cap * 5) // 8, 64 << 20))
    return tile_budget, int(min(vmem_limit, cap))


def _make_slab(a, force_lanes=None):
    """Flatten to a dense (R, LANES) slab; pad with zeros only if unavoidable."""
    t = int(np.prod(a.shape))
    flat = a.reshape(t)
    lane_options = (force_lanes,) if force_lanes is not None else (1024, 512, 256, 128)
    for lanes in lane_options:
        if t % lanes == 0:
            return flat.reshape(t // lanes, lanes)
    lanes = lane_options[-1]
    pad = (-t) % lanes
    flat = jnp.pad(flat, (0, pad))                    # zeros contribute 0 to SSE
    return flat.reshape((t + pad) // lanes, lanes)


def _pick_block_rows(rows, lanes, itemsize, tile_budget):
    """Rows per block, sized by bytes: x,r double-buffered + f32 accumulator."""
    per_row = lanes * (4 * itemsize + 4)
    tr = (tile_budget // per_row) // 8 * 8
    tr = max(8, tr)
    if tr >= rows:
        return rows                                   # full extent is always legal
    return tr


# --------------------------------------------------------------------------- #
# Public entry point
# --------------------------------------------------------------------------- #
def loss_unsupervised_with_encoder_decoder(x, f, r, m, lamb=1.0, *,
                                           _force_lanes=None, _force_rows=None):
    """Pallas forward of LossUnsupervisedWithEncoderDecoder.

    Returns (total, loss_r, intra, inter) exactly like the PyTorch module.
    """
    n = x.shape[0]
    x_slab = _make_slab(x, _force_lanes)
    r_slab = _make_slab(r, _force_lanes)
    rows, lanes = x_slab.shape

    tile_budget, vmem_limit = _vmem_config()
    itemsize = jnp.dtype(x_slab.dtype).itemsize
    if _force_rows is not None:
        tr = min(int(_force_rows), rows)
    else:
        tr = _pick_block_rows(rows, lanes, itemsize, tile_budget)

    row_tiles = pl.cdiv(rows, tr)
    n_parallel = 2 if row_tiles >= 2 else 1           # use both TCs on v7x
    tiles_per_part = pl.cdiv(row_tiles, n_parallel)
    n_full = rows // tr                               # tiles with no ragged rows
    needs_mask = (n_parallel * tiles_per_part) > n_full

    def xr_index_map(p_, j_):
        g_ = p_ * tiles_per_part + j_
        return (jnp.minimum(g_, row_tiles - 1), 0)    # clamp keeps DMAs in-bounds

    kernel = functools.partial(_loss_kernel, rows_valid=rows, n_full=n_full,
                               needs_mask=needs_mask)

    out = pl.pallas_call(
        kernel,
        out_shape=jax.ShapeDtypeStruct((n_parallel, 8, 128), jnp.float32),
        grid=(n_parallel, tiles_per_part),
        in_specs=[
            pl.BlockSpec((tr, lanes), xr_index_map),          # x slab tile
            pl.BlockSpec((tr, lanes), xr_index_map),          # r slab tile
            pl.BlockSpec(f.shape, lambda p_, j_: (0, 0)),     # f resident in VMEM
            pl.BlockSpec(m.shape, lambda p_, j_: (0, 0)),     # m resident in VMEM
        ],
        out_specs=pl.BlockSpec((1, 8, 128), lambda p_, j_: (p_, 0, 0)),
        scratch_shapes=[
            pltpu.VMEM((tr, lanes), jnp.float32),             # SSE accumulator
            pltpu.SMEM((2,), jnp.float32),                    # stashed intra/inter
        ],
        compiler_params=pltpu.CompilerParams(
            dimension_semantics=("parallel", "arbitrary"),
            vmem_limit_bytes=vmem_limit),
    )(x_slab, r_slab, f, m)

    loss_r = jnp.sum(out[:, 0, 0]) / n                # combine per-core partials
    intra = out[0, 0, 1]
    inter = out[0, 0, 2]
    total = loss_r + intra - lamb * inter
    return total, loss_r, intra, inter


# --------------------------------------------------------------------------- #
# Pure-JAX reference (mirrors the PyTorch forward) and self-test
# --------------------------------------------------------------------------- #
def _reference(x, f, r, m, lamb=1.0):
    n = x.shape[0]
    e = (x.astype(jnp.float32) - r.astype(jnp.float32)).reshape(n, -1)
    loss_r = jnp.mean(jnp.sum(e * e, axis=1))
    d = jnp.sqrt(jnp.sum((f[:, None, :] - m[None, :, :]) ** 2, axis=-1))   # (N, K)
    p = jax.nn.softmax(-d * d, axis=1)
    intra = jnp.mean(jnp.sum(p * d, axis=1))
    mbar = jnp.mean(m, axis=0)
    dm = jnp.sqrt(jnp.sum((mbar[None, :] - m) ** 2, axis=-1))              # (K,)
    pm = jax.nn.softmax(-dm * dm)
    inter = jnp.sum(pm * dm)
    total = loss_r + intra - lamb * inter
    return total, loss_r, intra, inter


if __name__ == "__main__":
    num_clusters, feature_size = 4, 32
    N, C, H, W = 8, 4, 16, 16
    lamb = 1.0

    # Deterministic parameter init mirroring LossUnsupervisedEntropy.__init__
    rng = np.random.RandomState(0)
    m_np = rng.rand(num_clusters, feature_size)
    if num_clusters < feature_size:
        _, _, vh = np.linalg.svd(m_np, full_matrices=False)
        m_np = vh[:]
    m_np = m_np / np.linalg.norm(m_np, axis=1).reshape(-1, 1)
    m = jnp.asarray(m_np, dtype=jnp.float32)

    key = jax.random.PRNGKey(0)
    kx, kf, kr = jax.random.split(key, 3)
    x = jax.random.normal(kx, (N, C, H, W), dtype=jnp.float32)
    r = x + 0.1 * jax.random.normal(kr, (N, C, H, W), dtype=jnp.float32)
    f = jax.random.normal(kf, (N, feature_size), dtype=jnp.float32)

    ref = _reference(x, f, r, m, lamb)

    # Default (byte-sized tiles; single block at this small size).
    out = jax.block_until_ready(
        loss_unsupervised_with_encoder_decoder(x, f, r, m, lamb))
    for got, want in zip(out, ref):
        np.testing.assert_allclose(np.asarray(got), np.asarray(want),
                                   rtol=2e-4, atol=1e-5)

    # Forced small tiles: exercises the multi-tile grid, the 2-way parallel
    # split, the ragged-tile mask and the clamped duplicate tile.
    out2 = jax.block_until_ready(
        loss_unsupervised_with_encoder_decoder(x, f, r, m, lamb,
                                               _force_lanes=128, _force_rows=24))
    for got, want in zip(out2, ref):
        np.testing.assert_allclose(np.asarray(got), np.asarray(want),
                                   rtol=2e-4, atol=1e-5)

    print("KERNEL_OK")
</pallas_src>

<mosaic_0001>
module attributes {stable_mosaic.version = 11 : i64} {
  func.func @_loss_kernel(%arg0: i32, %arg1: i32, %arg2: memref<8x1024xf32, #tpu.memory_space<vmem>>, %arg3: memref<8x1024xf32, #tpu.memory_space<vmem>>, %arg4: memref<8x32xf32, #tpu.memory_space<vmem>>, %arg5: memref<4x32xf32, #tpu.memory_space<vmem>>, %arg6: memref<1x8x128xf32, #tpu.memory_space<vmem>>, %arg7: memref<8x1024xf32, #tpu.memory_space<vmem>>, %arg8: memref<2xf32, #tpu.memory_space<smem>>) attributes {dimension_semantics = [#tpu.dimension_semantics<parallel>, #tpu.dimension_semantics<arbitrary>], iteration_bounds = array<i64: 1, 1>, scalar_prefetch = 0 : i64, scratch_operands = 2 : i64, tpu.core_type = #tpu.core_type<tc>, window_params = [{transform_indices = @transform_0, window_bounds = array<i64: 8, 1024>}, {transform_indices = @transform_1, window_bounds = array<i64: 8, 1024>}, {pipeline_mode = #tpu.pipeline_mode<synchronous>, transform_indices = @transform_2, window_bounds = array<i64: 8, 32>}, {pipeline_mode = #tpu.pipeline_mode<synchronous>, transform_indices = @transform_3, window_bounds = array<i64: 4, 32>}, {transform_indices = @transform_4, window_bounds = array<i64: 1, 8, 128>}]} {
    %c0_i32 = arith.constant 0 : i32
    %0 = arith.cmpi eq, %arg1, %c0_i32 : i32
    %1 = arith.extui %0 : i1 to i32
    %c0_i32_0 = arith.constant 0 : i32
    %2 = arith.cmpi ne, %1, %c0_i32_0 : i32
    scf.if %2 {
      %cst = arith.constant 0.000000e+00 : f32
      %13 = vector.broadcast %cst : f32 to vector<8x1024xf32>
      %c0_10 = arith.constant 0 : index
      %c0_11 = arith.constant 0 : index
      %14 = vector.load %arg7[%c0_10, %c0_11] : memref<8x1024xf32, #tpu.memory_space<vmem>>, vector<8x1024xf32>
      tpu.vector_store %arg7[%c0_10, %c0_11], %13 {strides = array<i32>} : memref<8x1024xf32, #tpu.memory_space<vmem>>, vector<8x1024xf32>,
      %c0_12 = arith.constant 0 : index
      %c0_13 = arith.constant 0 : index
      %15 = vector.load %arg4[%c0_12, %c0_13] : memref<8x32xf32, #tpu.memory_space<vmem>>, vector<8x32xf32>
      %c0_14 = arith.constant 0 : index
      %c0_15 = arith.constant 0 : index
      %16 = vector.load %arg5[%c0_14, %c0_15] : memref<4x32xf32, #tpu.memory_space<vmem>>, vector<4x32xf32>
      %17 = vector.shape_cast %15 : vector<8x32xf32> to vector<8x1x32xf32>
      %18 = vector.shape_cast %16 : vector<4x32xf32> to vector<1x4x32xf32>
      %19 = vector.broadcast %17 : vector<8x1x32xf32> to vector<8x4x32xf32>
      %20 = vector.broadcast %18 : vector<1x4x32xf32> to vector<8x4x32xf32>
      %21 = arith.subf %19, %20 : vector<8x4x32xf32>
      %22 = arith.mulf %21, %21 : vector<8x4x32xf32>
      %cst_16 = arith.constant dense<0.000000e+00> : vector<8x4xf32>
      %23 = vector.multi_reduction <add>, %22, %cst_16 [2] : vector<8x4x32xf32> to vector<8x4xf32>
      %24 = math.sqrt %23 : vector<8x4xf32>
      %cst_17 = arith.constant 0.000000e+00 : f32
      %25 = vector.broadcast %cst_17 : f32 to vector<8x4xf32>
      %26 = arith.subf %25, %23 : vector<8x4xf32>
      %cst_18 = arith.constant dense<0xFF800000> : vector<8xf32>
      %27 = vector.multi_reduction <maximumf>, %26, %cst_18 [1] : vector<8x4xf32> to vector<8xf32>
      %28 = vector.shape_cast %27 : vector<8xf32> to vector<8x1xf32>
      %29 = vector.broadcast %28 : vector<8x1xf32> to vector<8x4xf32>
      %30 = arith.subf %26, %29 : vector<8x4xf32>
      %31 = math.exp %30 : vector<8x4xf32>
      %cst_19 = arith.constant dense<0.000000e+00> : vector<8xf32>
      %32 = vector.multi_reduction <add>, %31, %cst_19 [1] : vector<8x4xf32> to vector<8xf32>
      %33 = vector.shape_cast %32 : vector<8xf32> to vector<8x1xf32>
      %34 = vector.broadcast %33 : vector<8x1xf32> to vector<8x4xf32>
      %35 = arith.divf %31, %34 : vector<8x4xf32>
      %36 = arith.mulf %35, %24 : vector<8x4xf32>
      %37 = vector.shape_cast %36 : vector<8x4xf32> to vector<1x8x4xf32>
      %cst_20 = arith.constant dense<0.000000e+00> : vector<1xf32>
      %38 = vector.multi_reduction <add>, %37, %cst_20 [1, 2] : vector<1x8x4xf32> to vector<1xf32>
      %39 = vector.shape_cast %38 : vector<1xf32> to vector<1x1x1xf32>
      %40 = vector.extract %39[0, 0, 0] : f32 from vector<1x1x1xf32>
      %cst_21 = arith.constant 8.000000e+00 : f32
      %41 = arith.divf %40, %cst_21 : f32
      %cst_22 = arith.constant dense<0.000000e+00> : vector<32xf32>
      %42 = vector.multi_reduction <add>, %16, %cst_22 [0] : vector<4x32xf32> to vector<32xf32>
      %43 = vector.shape_cast %42 : vector<32xf32> to vector<1x32xf32>
      %cst_23 = arith.constant 4.000000e+00 : f32
      %44 = vector.broadcast %cst_23 : f32 to vector<1x32xf32>
      %45 = arith.divf %43, %44 : vector<1x32xf32>
      %46 = vector.broadcast %45 : vector<1x32xf32> to vector<4x32xf32>
      %47 = arith.subf %16, %46 : vector<4x32xf32>
      %48 = arith.mulf %47, %47 : vector<4x32xf32>
      %cst_24 = arith.constant dense<0.000000e+00> : vector<4xf32>
      %49 = vector.multi_reduction <add>, %48, %cst_24 [1] : vector<4x32xf32> to vector<4xf32>
      %50 = vector.shape_cast %49 : vector<4xf32> to vector<4x1xf32>
      %51 = math.sqrt %50 : vector<4x1xf32>
      %cst_25 = arith.constant 0.000000e+00 : f32
      %52 = vector.broadcast %cst_25 : f32 to vector<4x1xf32>
      %53 = arith.subf %52, %50 : vector<4x1xf32>
      %cst_26 = arith.constant dense<0xFF800000> : vector<1xf32>
      %54 = vector.multi_reduction <maximumf>, %53, %cst_26 [0] : vector<4x1xf32> to vector<1xf32>
      %55 = vector.shape_cast %54 : vector<1xf32> to vector<1x1xf32>
      %56 = vector.broadcast %55 : vector<1x1xf32> to vector<4x1xf32>
      %57 = arith.subf %53, %56 : vector<4x1xf32>
      %58 = math.exp %57 : vector<4x1xf32>
      %cst_27 = arith.constant dense<0.000000e+00> : vector<1xf32>
      %59 = vector.multi_reduction <add>, %58, %cst_27 [0] : vector<4x1xf32> to vector<1xf32>
      %60 = vector.shape_cast %59 : vector<1xf32> to vector<1x1xf32>
      %61 = vector.broadcast %60 : vector<1x1xf32> to vector<4x1xf32>
      %62 = arith.divf %58, %61 : vector<4x1xf32>
      %63 = arith.mulf %62, %51 : vector<4x1xf32>
      %64 = vector.shape_cast %63 : vector<4x1xf32> to vector<1x4x1xf32>
      %cst_28 = arith.constant dense<0.000000e+00> : vector<1xf32>
      %65 = vector.multi_reduction <add>, %64, %cst_28 [1, 2] : vector<1x4x1xf32> to vector<1xf32>
      %66 = vector.shape_cast %65 : vector<1xf32> to vector<1x1x1xf32>
      %67 = vector.extract %66[0, 0, 0] : f32 from vector<1x1x1xf32>
      %c0_29 = arith.constant 0 : index
      %68 = memref.load %arg8[%c0_29] : memref<2xf32, #tpu.memory_space<smem>>
      memref.store %41, %arg8[%c0_29] : memref<2xf32, #tpu.memory_space<smem>>
      %c1 = arith.constant 1 : index
      %69 = memref.load %arg8[%c1] : memref<2xf32, #tpu.memory_space<smem>>
      memref.store %67, %arg8[%c1] : memref<2xf32, #tpu.memory_space<smem>>
    } else {
    }
    %c0 = arith.constant 0 : index
    %c0_1 = arith.constant 0 : index
    %3 = vector.load %arg2[%c0, %c0_1] : memref<8x1024xf32, #tpu.memory_space<vmem>>, vector<8x1024xf32>
    %c0_2 = arith.constant 0 : index
    %c0_3 = arith.constant 0 : index
    %4 = vector.load %arg3[%c0_2, %c0_3] : memref<8x1024xf32, #tpu.memory_space<vmem>>, vector<8x1024xf32>
    %5 = arith.subf %3, %4 : vector<8x1024xf32>
    %6 = arith.mulf %5, %5 : vector<8x1024xf32>
    %c0_4 = arith.constant 0 : index
    %c0_5 = arith.constant 0 : index
    %7 = vector.load %arg7[%c0_4, %c0_5] : memref<8x1024xf32, #tpu.memory_space<vmem>>, vector<8x1024xf32>
    %8 = arith.addf %7, %6 : vector<8x1024xf32>
    %c0_6 = arith.constant 0 : index
    %c0_7 = arith.constant 0 : index
    %9 = vector.load %arg7[%c0_6, %c0_7] : memref<8x1024xf32, #tpu.memory_space<vmem>>, vector<8x1024xf32>
    tpu.vector_store %arg7[%c0_6, %c0_7], %8 {strides = array<i32>} : memref<8x1024xf32, #tpu.memory_space<vmem>>, vector<8x1024xf32>,
    %c0_i32_8 = arith.constant 0 : i32
    %10 = arith.cmpi eq, %arg1, %c0_i32_8 : i32
    %11 = arith.extui %10 : i1 to i32
    %c0_i32_9 = arith.constant 0 : i32
    %12 = arith.cmpi ne, %11, %c0_i32_9 : i32
    scf.if %12 {
      %c0_10 = arith.constant 0 : index
      %c0_11 = arith.constant 0 : index
      %13 = vector.load %arg7[%c0_10, %c0_11] : memref<8x1024xf32, #tpu.memory_space<vmem>>, vector<8x1024xf32>
      %14 = vector.shape_cast %13 : vector<8x1024xf32> to vector<1x8x1024xf32>
      %cst = arith.constant dense<0.000000e+00> : vector<1xf32>
      %15 = vector.multi_reduction <add>, %14, %cst [1, 2] : vector<1x8x1024xf32> to vector<1xf32>
      %16 = vector.shape_cast %15 : vector<1xf32> to vector<1x1x1xf32>
      %17 = vector.extract %16[0, 0, 0] : f32 from vector<1x1x1xf32>
      %18 = tpu.iota {dimensions = array<i32: 1>} : vector<1x8x128xi32>
      %c128_i32 = arith.constant 128 : i32
      %19 = vector.broadcast %c128_i32 : i32 to vector<1x8x128xi32>
      %20 = arith.muli %18, %19 : vector<1x8x128xi32>
      %21 = tpu.iota {dimensions = array<i32: 2>} : vector<1x8x128xi32>
      %22 = arith.addi %20, %21 : vector<1x8x128xi32>
      %c0_i32_12 = arith.constant 0 : i32
      %23 = vector.broadcast %c0_i32_12 : i32 to vector<1x8x128xi32>
      %24 = arith.cmpi eq, %22, %23 : vector<1x8x128xi32>
      %c1_i32 = arith.constant 1 : i32
      %25 = vector.broadcast %c1_i32 : i32 to vector<1x8x128xi32>
      %26 = arith.cmpi eq, %22, %25 : vector<1x8x128xi32>
      %c0_13 = arith.constant 0 : index
      %27 = memref.load %arg8[%c0_13] : memref<2xf32, #tpu.memory_space<smem>>
      %c2_i32 = arith.constant 2 : i32
      %28 = vector.broadcast %c2_i32 : i32 to vector<1x8x128xi32>
      %29 = arith.cmpi eq, %22, %28 : vector<1x8x128xi32>
      %c1 = arith.constant 1 : index
      %30 = memref.load %arg8[%c1] : memref<2xf32, #tpu.memory_space<smem>>
      %cst_14 = arith.constant 0.000000e+00 : f32
      %31 = vector.broadcast %30 : f32 to vector<1x8x128xf32>
      %32 = vector.broadcast %cst_14 : f32 to vector<1x8x128xf32>
      %33 = arith.select %29, %31, %32 : vector<1x8x128xi1>, vector<1x8x128xf32>
      %34 = vector.broadcast %27 : f32 to vector<1x8x128xf32>
      %35 = arith.select %26, %34, %33 : vector<1x8x128xi1>, vector<1x8x128xf32>
      %36 = vector.broadcast %17 : f32 to vector<1x8x128xf32>
      %37 = arith.select %24, %36, %35 : vector<1x8x128xi1>, vector<1x8x128xf32>
      %c0_15 = arith.constant 0 : index
      %c0_16 = arith.constant 0 : index
      %c0_17 = arith.constant 0 : index
      %38 = vector.load %arg6[%c0_15, %c0_16, %c0_17] : memref<1x8x128xf32, #tpu.memory_space<vmem>>, vector<1x8x128xf32>
      tpu.vector_store %arg6[%c0_15, %c0_16, %c0_17], %37 {strides = array<i32>} : memref<1x8x128xf32, #tpu.memory_space<vmem>>, vector<1x8x128xf32>,
    } else {
    }
    return
  }
  func.func @transform_0(%arg0: i32, %arg1: i32) -> (i32, i32) {
    %c1_i32 = arith.constant 1 : i32
    %0 = arith.muli %arg0, %c1_i32 : i32
    %1 = arith.addi %0, %arg1 : i32
    %c0_i32 = arith.constant 0 : i32
    %2 = arith.minsi %1, %c0_i32 : i32
    %c0_i32_0 = arith.constant 0 : i32
    %c0_i32_1 = arith.constant 0 : i32
    return %2, %c0_i32_0 : i32, i32
  }
  func.func @transform_1(%arg0: i32, %arg1: i32) -> (i32, i32) {
    %c1_i32 = arith.constant 1 : i32
    %0 = arith.muli %arg0, %c1_i32 : i32
    %1 = arith.addi %0, %arg1 : i32
    %c0_i32 = arith.constant 0 : i32
    %2 = arith.minsi %1, %c0_i32 : i32
    %c0_i32_0 = arith.constant 0 : i32
    %c0_i32_1 = arith.constant 0 : i32
    return %2, %c0_i32_0 : i32, i32
  }
  func.func @transform_2(%arg0: i32, %arg1: i32) -> (i32, i32) {
    %c0_i32 = arith.constant 0 : i32
    %c0_i32_0 = arith.constant 0 : i32
    %c0_i32_1 = arith.constant 0 : i32
    return %c0_i32, %c0_i32_0 : i32, i32
  }
  func.func @transform_3(%arg0: i32, %arg1: i32) -> (i32, i32) {
    %c0_i32 = arith.constant 0 : i32
    %c0_i32_0 = arith.constant 0 : i32
    %c0_i32_1 = arith.constant 0 : i32
    return %c0_i32, %c0_i32_0 : i32, i32
  }
  func.func @transform_4(%arg0: i32, %arg1: i32) -> (i32, i32, i32) {
    %c0_i32 = arith.constant 0 : i32
    %c0_i32_0 = arith.constant 0 : i32
    %c0_i32_1 = arith.constant 0 : i32
    return %arg0, %c0_i32, %c0_i32_0 : i32, i32, i32
  }
}

</mosaic_0001>

<llo_original>
// kernel: tpu_custom_call.1
$region0: #{tpu_custom_call.1}
  #allocation0 [shape = 'u32[]', space=smem, size = 0x4, offset = 0x4, fixed_abs, tag = 'smem constant byte address 0x4 - core index']
  #allocation1 [shape = 'u32[144,128]{1,0:T(1,128)}', space=vmem, size = 0x12000, scoped, tag = 'internal scratch']
  #allocation2 [shape = 'f32[8,1024]{1,0:T(8,128)}', space=vmem, size = 0x8000, scoped, tag = 'scratch operand']
  #allocation3 [shape = 'f32[2]{0:T(128)}', space=smem, size = 0x200, scoped, tag = 'scratch operand']
  %s0 = inlined_call_operand.hbm [shape: f32[8,1024], index: 0, kind: input, shape index: {}]
  %s1 = inlined_call_operand.hbm [shape: f32[8,1024], index: 1, kind: input, shape index: {}]
  %s2 = inlined_call_operand.hbm [shape: f32[8,32], index: 2, kind: input, shape index: {}]
  %s3 = inlined_call_operand.vmem [shape: f32[4,32], index: 3, kind: input, shape index: {}]
  %s4 = inlined_call_operand.hbm [shape: f32[1,8,128], index: 4, kind: output, shape index: {}]
  %s5 = sld [smem:[#allocation0]]
  $region46: #{tpu_custom_call.1} parent=0
    _
  %s7 = ssub.s32 1, %s5
  %s8 = scalar_select 0, %s7, %s5
  $region1: #{tpu_custom_call.1} parent=0
    #allocation4 [shape = 'u8[32768]{0}', space=vmem, size = 0x8000, scoped, tag = 'input window, operand 0, single buffered']
    #allocation5 [shape = 's32[1]{0}', space=sflag, size = 0x4, scoped, tag = 'scoped memory for tpu_custom_call.1']
    #allocation6 [shape = 's32[1]{0}', space=sflag, size = 0x4, scoped, tag = 'scoped memory for tpu_custom_call.1']
    #allocation7 [shape = 'u8[32768]{0}', space=vmem, size = 0x8000, scoped, tag = 'input window, operand 1, single buffered']
    #allocation8 [shape = 's32[1]{0}', space=sflag, size = 0x4, scoped, tag = 'scoped memory for tpu_custom_call.1']
    #allocation9 [shape = 'u8[4096]{0}', space=vmem, size = 0x1000, scoped, tag = 'input window, operand 2, single buffered']
    #allocation10 [shape = 'u8[4096]{0}', space=vmem, size = 0x1000, scoped, tag = 'output window, operand 0, single buffered']
    %9 = vsyncpa [#allocation5], 0
    %10 = vsyncpa [#allocation8], 0
    %11 = vsyncpa [#allocation6], 0
    // Predicated region
    $region2: #{tpu_custom_call.1} parent=1 // pred_check
      _
    $region3: #{tpu_custom_call.1} parent=1 // pred_check_branch
      %13 = sbr.rel (0) target = $region5
    $region4: #{tpu_custom_call.1} parent=1 // pred_region
      %s14 = sadd.s32 0, 0
      %p15 = scmp.lt.s32.totalorder %s14, 0
      %s16 = scalar_select %p15, %s14, 0
      %s18 = ssub.s32 1024, 1024
      %19 = vsyncadd [#allocation5], %s18
      %s20 = smul.addr %s16, 8
      %s21 = smul.addr %s20, 128
      %s22 = scalar_lea.hbm %s0, %s21
      %s24 = sshll.u32 [#allocation4], 4
      %s25 = int_to_ptr.vmem [resolvable:$true] %s24
      %27 = dma.hbm_to_vmem [thread:$0]  %s22, 1024, %s25, [#allocation5]
    $region5: #{tpu_custom_call.1} parent=1 // pred_fallthru
      _
    // Predicated region
    $region6: #{tpu_custom_call.1} parent=1 // pred_check
      _
    $region7: #{tpu_custom_call.1} parent=1 // pred_check_branch
      %29 = sbr.rel (0) target = $region9
    $region8: #{tpu_custom_call.1} parent=1 // pred_region
      %s30 = sadd.s32 0, 0
      %p31 = scmp.lt.s32.totalorder %s30, 0
      %s32 = scalar_select %p31, %s30, 0
      %s34 = ssub.s32 1024, 1024
      %35 = vsyncadd [#allocation8], %s34
      %s36 = smul.addr %s32, 8
      %s37 = smul.addr %s36, 128
      %s38 = scalar_lea.hbm %s1, %s37
      %s40 = sshll.u32 [#allocation7], 4
      %s41 = int_to_ptr.vmem [resolvable:$true] %s40
      %43 = dma.hbm_to_vmem [thread:$0]  %s38, 1024, %s41, [#allocation8]
    $region9: #{tpu_custom_call.1} parent=1 // pred_fallthru
      _
    // Predicated region
    $region10: #{tpu_custom_call.1} parent=1 // pred_check
      _
    $region11: #{tpu_custom_call.1} parent=1 // pred_check_branch
      %45 = sbr.rel (0) target = $region13
    $region12: #{tpu_custom_call.1} parent=1 // pred_region
      %s47 = ssub.s32 128, 128
      %48 = vsyncadd [#allocation8], %s47
      %s50 = sshll.u32 [#allocation9], 4
      %s51 = int_to_ptr.vmem [resolvable:$true] %s50
      %53 = dma.hbm_to_vmem [thread:$0]  %s2, 128, %s51, [#allocation8]
    $region13: #{tpu_custom_call.1} parent=1 // pred_fallthru
      _
    // Predicated region
    $region14: #{tpu_custom_call.1} parent=1 // pred_check
      _
    $region15: #{tpu_custom_call.1} parent=1 // pred_check_branch
      %55 = sbr.rel (0) target = $region17
    $region16: #{tpu_custom_call.1} parent=1 // pred_region
      _
    $region17: #{tpu_custom_call.1} parent=1 // pred_fallthru
      _
    // Predicated region
    $region18: #{tpu_custom_call.1} parent=1 // pred_check
      _
    $region19: #{tpu_custom_call.1} parent=1 // pred_check_branch
      %57 = sbr.rel (0) target = $region21
    $region20: #{tpu_custom_call.1} parent=1 // pred_region
      %58 = dma.done [#allocation5], 1024
    $region21: #{tpu_custom_call.1} parent=1 // pred_fallthru
      _
    // Predicated region
    $region22: #{tpu_custom_call.1} parent=1 // pred_check
      _
    $region23: #{tpu_custom_call.1} parent=1 // pred_check_branch
      %60 = sbr.rel (0) target = $region25
    $region24: #{tpu_custom_call.1} parent=1 // pred_region
      %61 = dma.done [#allocation8], 1024
    $region25: #{tpu_custom_call.1} parent=1 // pred_fallthru
      _
    // Predicated region
    $region26: #{tpu_custom_call.1} parent=1 // pred_check
      _
    $region27: #{tpu_custom_call.1} parent=1 // pred_check_branch
      %63 = sbr.rel (0) target = $region29
    $region28: #{tpu_custom_call.1} parent=1 // pred_region
      %64 = dma.done [#allocation8], 128
    $region29: #{tpu_custom_call.1} parent=1 // pred_fallthru
      _
    %s65 = sadd.s32 0, 0
    %p66 = scmp.lt.s32.totalorder %s65, 0
    %s67 = scalar_select %p66, %s65, 0
    %s68 = sadd.s32 0, 0
    %p69 = scmp.lt.s32.totalorder %s68, 0
    %s70 = scalar_select %p69, %s68, 0
    %p71 = scmp.eq.s32.totalorder 0, 0
    // Predicated region
    $region30: #{tpu_custom_call.1} parent=1 // pred_check
      %p72 = pneg %p71
    $region31: #{tpu_custom_call.1} parent=1 // pred_check_branch
      %74 = sbr.rel (%p72) target = $region33
    $region32: #{tpu_custom_call.1} parent=1 // pred_region
      %75 = vst [vmem:[#allocation2] sm:$0xff] 0.0
      %76 = vst [vmem:[#allocation2 + $0x8] sm:$0xff] 0.0
      %77 = vst [vmem:[#allocation2 + $0x10] sm:$0xff] 0.0
      %78 = vst [vmem:[#allocation2 + $0x18] sm:$0xff] 0.0
      %79 = vst [vmem:[#allocation2 + $0x20] sm:$0xff] 0.0
      %80 = vst [vmem:[#allocation2 + $0x28] sm:$0xff] 0.0
      %81 = vst [vmem:[#allocation2 + $0x30] sm:$0xff] 0.0
      %82 = vst [vmem:[#allocation2 + $0x38] sm:$0xff] 0.0
      %v83 = vld [vmem:[#allocation9] sm:$0xff]
      %v84 = vld [vmem:[%s3] sm:$0xf]
      %v86 = vcombine.high %v83, %v83
      %v88 = vunpack.c.l.s4 1966171168
      %v89 = vunpack.c.0.s8 %v88
      %v90 = vlaneseq
      %v91 = vshrl.u32 %v90, 7
      %v92 = vsub.s32 %v89, %v91
      %v93 = vrot.slane %v83, %v92
      %v95 = vunpack.c.l.s4 1966171168
      %v96 = vunpack.c.0.s8 %v95
      %v97 = vlaneseq
      %v98 = vshrl.u32 %v97, 7
      %v99 = vsub.s32 %v96, %v98
      %v100 = vrot.slane %v86, %v99
      %v101 = vcombine.high %v93, %v93
      %v102 = vcombine.high %v100, %v100
      %v104 = vunpack.c.l.s4 1966171168
      %v105 = vunpack.c.0.s8 %v104
      %v106 = vlaneseq
      %v107 = vshrl.u32 %v106, 7
      %v108 = vsub.s32 %v105, %v107
      %v109 = vrot.slane %v93, %v108
      %v111 = vunpack.c.l.s4 1966171168
      %v112 = vunpack.c.0.s8 %v111
      %v113 = vlaneseq
      %v114 = vshrl.u32 %v113, 7
      %v115 = vsub.s32 %v112, %v114
      %v116 = vrot.slane %v100, %v115
      %v118 = vunpack.c.l.s4 1966171168
      %v119 = vunpack.c.0.s8 %v118
      %v120 = vlaneseq
      %v121 = vshrl.u32 %v120, 7
      %v122 = vsub.s32 %v119, %v121
      %v123 = vrot.slane %v101, %v122
      %v125 = vunpack.c.l.s4 1966171168
      %v126 = vunpack.c.0.s8 %v125
      %v127 = vlaneseq
      %v128 = vshrl.u32 %v127, 7
      %v129 = vsub.s32 %v126, %v128
      %v130 = vrot.slane %v102, %v129
      %v131 = vcombine.high %v109, %v109
      %v132 = vcombine.high %v116, %v116
      %v133 = vcombine.high %v123, %v123
      %v134 = vcombine.high %v130, %v130
      %v135 = vlaneseq
      %v136 = vshrl.u32 %v135, 7
      %v137 = vsub.s32 0, %v136
      %v138 = vrot.slane %v109, %v137
      %v139 = vlaneseq
      %v140 = vshrl.u32 %v139, 7
      %v141 = vsub.s32 0, %v140
      %v142 = vrot.slane %v123, %v141
      %v143 = vlaneseq
      %v144 = vshrl.u32 %v143, 7
      %v145 = vsub.s32 0, %v144
      %v146 = vrot.slane %v131, %v145
      %v147 = vlaneseq
      %v148 = vshrl.u32 %v147, 7
      %v149 = vsub.s32 0, %v148
      %v150 = vrot.slane %v133, %v149
      %v151 = vlaneseq
      %v152 = vshrl.u32 %v151, 7
      %v153 = vsub.s32 0, %v152
      %v154 = vrot.slane %v116, %v153
      %v155 = vlaneseq
      %v156 = vshrl.u32 %v155, 7
      %v157 = vsub.s32 0, %v156
      %v158 = vrot.slane %v130, %v157
      %v159 = vlaneseq
      %v160 = vshrl.u32 %v159, 7
      %v161 = vsub.s32 0, %v160
      %v162 = vrot.slane %v132, %v161
      %v163 = vlaneseq
      %v164 = vshrl.u32 %v163, 7
      %v165 = vsub.s32 0, %v164
      %v166 = vrot.slane %v134, %v165
      %v175 = vsub.f32 %v138, %v84
      %v176 = vsub.f32 %v142, %v84
      %v177 = vsub.f32 %v146, %v84
      %v178 = vsub.f32 %v150, %v84
      %v179 = vsub.f32 %v154, %v84
      %v180 = vsub.f32 %v158, %v84
      %v181 = vsub.f32 %v162, %v84
      %v182 = vsub.f32 %v166, %v84
      %v183 = vmul.f32 %v175, %v175
      %v184 = vmul.f32 %v176, %v176
      %v185 = vmul.f32 %v177, %v177
      %v186 = vmul.f32 %v178, %v178
      %v187 = vmul.f32 %v179, %v179
      %v188 = vmul.f32 %v180, %v180
      %v189 = vmul.f32 %v181, %v181
      %v190 = vmul.f32 %v182, %v182
      %vm191 = vcmask 257024
      %v192 = vsel %vm191, %v183, 0.0
      %193 = vadd.xlane.f32.xlu0 %v192
      %v194 = vpop.xlane.xlu0 %193
      %v195 = vsel %vm191, %v184, 0.0
      %196 = vadd.xlane.f32.xlu0 %v195
      %v197 = vpop.xlane.xlu0 %196
      %v198 = vsel %vm191, %v185, 0.0
      %199 = vadd.xlane.f32.xlu0 %v198
      %v200 = vpop.xlane.xlu0 %199
      %v201 = vsel %vm191, %v186, 0.0
      %202 = vadd.xlane.f32.xlu0 %v201
      %v203 = vpop.xlane.xlu0 %202
      %v204 = vsel %vm191, %v187, 0.0
      %205 = vadd.xlane.f32.xlu0 %v204
      %v206 = vpop.xlane.xlu0 %205
      %v207 = vsel %vm191, %v188, 0.0
      %208 = vadd.xlane.f32.xlu0 %v207
      %v209 = vpop.xlane.xlu0 %208
      %v210 = vsel %vm191, %v189, 0.0
      %211 = vadd.xlane.f32.xlu0 %v210
      %v212 = vpop.xlane.xlu0 %211
      %v213 = vsel %vm191, %v190, 0.0
      %214 = vadd.xlane.f32.xlu0 %v213
      %v215 = vpop.xlane.xlu0 %214
      %v216 = vrsqrt.pop %v194
      %v217 = vmul.f32 %v194, %v216
      %vm218 = vcmp.eq.f32.partialorder %v194, inf
      %v219 = vsel %vm218, %v194, %v217
      %vm220 = vcmp.eq.f32.partialorder %v194, 0.0
      %v221 = vand.u32 %v194, 2147483648
      %v222 = vsel %vm220, %v221, %v219
      %v223 = vrsqrt.pop %v197
      %v224 = vmul.f32 %v197, %v223
      %vm225 = vcmp.eq.f32.partialorder %v197, inf
      %v226 = vsel %vm225, %v197, %v224
      %vm227 = vcmp.eq.f32.partialorder %v197, 0.0
      %v228 = vand.u32 %v197, 2147483648
      %v229 = vsel %vm227, %v228, %v226
      %v230 = vrsqrt.pop %v200
      %v231 = vmul.f32 %v200, %v230
      %vm232 = vcmp.eq.f32.partialorder %v200, inf
      %v233 = vsel %vm232, %v200, %v231
      %vm234 = vcmp.eq.f32.partialorder %v200, 0.0
      %v235 = vand.u32 %v200, 2147483648
      %v236 = vsel %vm234, %v235, %v233
      %v237 = vrsqrt.pop %v203
      %v238 = vmul.f32 %v203, %v237
      %vm239 = vcmp.eq.f32.partialorder %v203, inf
      %v240 = vsel %vm239, %v203, %v238
      %vm241 = vcmp.eq.f32.partialorder %v203, 0.0
      %v242 = vand.u32 %v203, 2147483648
      %v243 = vsel %vm241, %v242, %v240
      %v244 = vrsqrt.pop %v206
      %v245 = vmul.f32 %v206, %v244
      %vm246 = vcmp.eq.f32.partialorder %v206, inf
      %v247 = vsel %vm246, %v206, %v245
      %vm248 = vcmp.eq.f32.partialorder %v206, 0.0
      %v249 = vand.u32 %v206, 2147483648
      %v250 = vsel %vm248, %v249, %v247
      %v251 = vrsqrt.pop %v209
      %v252 = vmul.f32 %v209, %v251
      %vm253 = vcmp.eq.f32.partialorder %v209, inf
      %v254 = vsel %vm253, %v209, %v252
      %vm255 = vcmp.eq.f32.partialorder %v209, 0.0
      %v256 = vand.u32 %v209, 2147483648
      %v257 = vsel %vm255, %v256, %v254
      %v258 = vrsqrt.pop %v212
      %v259 = vmul.f32 %v212, %v258
      %vm260 = vcmp.eq.f32.partialorder %v212, inf
      %v261 = vsel %vm260, %v212, %v259
      %vm262 = vcmp.eq.f32.partialorder %v212, 0.0
      %v263 = vand.u32 %v212, 2147483648
      %v264 = vsel %vm262, %v263, %v261
      %v265 = vrsqrt.pop %v215
      %v266 = vmul.f32 %v215, %v265
      %vm267 = vcmp.eq.f32.partialorder %v215, inf
      %v268 = vsel %vm267, %v215, %v266
      %vm269 = vcmp.eq.f32.partialorder %v215, 0.0
      %v270 = vand.u32 %v215, 2147483648
      %v271 = vsel %vm269, %v270, %v268
      %v272 = vsub.f32 0.0, %v194
      %v273 = vsub.f32 0.0, %v197
      %v274 = vsub.f32 0.0, %v200
      %v275 = vsub.f32 0.0, %v203
      %v276 = vsub.f32 0.0, %v206
      %v277 = vsub.f32 0.0, %v209
      %v278 = vsub.f32 0.0, %v212
      %v279 = vsub.f32 0.0, %v215
      %v288 = vlaneseq
      %v289 = vand.u32 %v288, 127
      %v290 = vlaneseq
      %v291 = vshrl.u32 %v290, 7
      %v292 = vsub.s32 %v289, %v291
      %v293 = vrot.slane %v272, %v292
      %v294 = vlaneseq
      %v295 = vshrl.u32 %v294, 7
      %v296 = vsub.s32 %v289, %v295
      %v297 = vrot.slane %v273, %v296
      %v298 = vlaneseq
      %v299 = vshrl.u32 %v298, 7
      %v300 = vsub.s32 %v289, %v299
      %v301 = vrot.slane %v274, %v300
      %v302 = vlaneseq
      %v303 = vshrl.u32 %v302, 7
      %v304 = vsub.s32 %v289, %v303
      %v305 = vrot.slane %v275, %v304
      %v306 = vlaneseq
      %v307 = vshrl.u32 %v306, 7
      %v308 = vsub.s32 %v289, %v307
      %v309 = vrot.slane %v276, %v308
      %v310 = vlaneseq
      %v311 = vshrl.u32 %v310, 7
      %v312 = vsub.s32 %v289, %v311
      %v313 = vrot.slane %v277, %v312
      %v314 = vlaneseq
      %v315 = vshrl.u32 %v314, 7
      %v316 = vsub.s32 %v289, %v315
      %v317 = vrot.slane %v278, %v316
      %v318 = vlaneseq
      %v319 = vshrl.u32 %v318, 7
      %v320 = vsub.s32 %v289, %v319
      %v321 = vrot.slane %v279, %v320
      %vm322 = vcmask 1041409
      %v323 = vsel %vm322, %v297, %v293
      %vm324 = vcmask 1042434
      %v325 = vsel %vm324, %v301, %v323
      %vm326 = vcmask 1043459
      %v327 = vsel %vm326, %v305, %v325
      %vm328 = vcmask 1044484
      %v329 = vsel %vm328, %v309, %v327
      %vm330 = vcmask 1045509
      %v331 = vsel %vm330, %v313, %v329
      %vm332 = vcmask 1046534
      %v333 = vsel %vm332, %v317, %v331
      %vm334 = vcmask 1047559
      %v335 = vsel %vm334, %v321, %v333
      %vm337 = vcmask 31744
      %v338 = vsel %vm337, %v335, -inf
      %339 = vmax.xlane.f32.xlu0 %v338
      %v340 = vpop.xlane.xlu0 %339
      %v342 = vlaneseq
      %v343 = vshrl.u32 %v342, 7
      %v344 = vsub.s32 0, %v343
      %v345 = vrot.slane %v340, %v344
      %v346 = vlaneseq
      %v347 = vshrl.u32 %v346, 7
      %v348 = vsub.s32 1, %v347
      %v349 = vrot.slane %v340, %v348
      %v350 = vlaneseq
      %v351 = vshrl.u32 %v350, 7
      %v352 = vsub.s32 2, %v351
      %v353 = vrot.slane %v340, %v352
      %v354 = vlaneseq
      %v355 = vshrl.u32 %v354, 7
      %v356 = vsub.s32 3, %v355
      %v357 = vrot.slane %v340, %v356
      %v358 = vlaneseq
      %v359 = vshrl.u32 %v358, 7
      %v360 = vsub.s32 4, %v359
      %v361 = vrot.slane %v340, %v360
      %v362 = vlaneseq
      %v363 = vshrl.u32 %v362, 7
      %v364 = vsub.s32 5, %v363
      %v365 = vrot.slane %v340, %v364
      %v366 = vlaneseq
      %v367 = vshrl.u32 %v366, 7
      %v368 = vsub.s32 6, %v367
      %v369 = vrot.slane %v340, %v368
      %v370 = vlaneseq
      %v371 = vshrl.u32 %v370, 7
      %v372 = vsub.s32 7, %v371
      %v373 = vrot.slane %v340, %v372
      %v382 = vsub.f32 %v272, %v345
      %v383 = vsub.f32 %v273, %v349
      %v384 = vsub.f32 %v274, %v353
      %v385 = vsub.f32 %v275, %v357
      %v386 = vsub.f32 %v276, %v361
      %v387 = vsub.f32 %v277, %v365
      %v388 = vsub.f32 %v278, %v369
      %v389 = vsub.f32 %v279, %v373
      %v390 = vmul.f32 %v382, 1.442695
      %v391 = vpow.pop %v390
      %v392 = vmul.f32 %v383, 1.442695
      %v393 = vpow.pop %v392
      %v394 = vmul.f32 %v384, 1.442695
      %v395 = vpow.pop %v394
      %v396 = vmul.f32 %v385, 1.442695
      %v397 = vpow.pop %v396
      %v398 = vmul.f32 %v386, 1.442695
      %v399 = vpow.pop %v398
      %v400 = vmul.f32 %v387, 1.442695
      %v401 = vpow.pop %v400
      %v402 = vmul.f32 %v388, 1.442695
      %v403 = vpow.pop %v402
      %v404 = vmul.f32 %v389, 1.442695
      %v405 = vpow.pop %v404
      %414 = vset.pattern.permute.xlu0 0
      %415 = vperm.xlu0 %414, %v391
      %v416 = vpop.permute.xlu0 %415
      %417 = vset.pattern.permute.xlu0 0
      %418 = vperm.xlu0 %417, %v393
      %v419 = vpop.permute.xlu0 %418
      %420 = vset.pattern.permute.xlu0 0
      %421 = vperm.xlu0 %420, %v395
      %v422 = vpop.permute.xlu0 %421
      %423 = vset.pattern.permute.xlu0 0
      %424 = vperm.xlu0 %423, %v397
      %v425 = vpop.permute.xlu0 %424
      %426 = vset.pattern.permute.xlu0 0
      %427 = vperm.xlu0 %426, %v399
      %v428 = vpop.permute.xlu0 %427
      %429 = vset.pattern.permute.xlu0 0
      %430 = vperm.xlu0 %429, %v401
      %v431 = vpop.permute.xlu0 %430
      %432 = vset.pattern.permute.xlu0 0
      %433 = vperm.xlu0 %432, %v403
      %v434 = vpop.permute.xlu0 %433
      %435 = vset.pattern.permute.xlu0 0
      %436 = vperm.xlu0 %435, %v405
      %v437 = vpop.permute.xlu0 %436
      %v438 = vlaneseq
      %v439 = vshrl.u32 %v438, 7
      %v440 = vsub.s32 %v289, %v439
      %v441 = vrot.slane %v416, %v440
      %v442 = vlaneseq
      %v443 = vshrl.u32 %v442, 7
      %v444 = vsub.s32 %v289, %v443
      %v445 = vrot.slane %v419, %v444
      %v446 = vlaneseq
      %v447 = vshrl.u32 %v446, 7
      %v448 = vsub.s32 %v289, %v447
      %v449 = vrot.slane %v422, %v448
      %v450 = vlaneseq
      %v451 = vshrl.u32 %v450, 7
      %v452 = vsub.s32 %v289, %v451
      %v453 = vrot.slane %v425, %v452
      %v454 = vlaneseq
      %v455 = vshrl.u32 %v454, 7
      %v456 = vsub.s32 %v289, %v455
      %v457 = vrot.slane %v428, %v456
      %v458 = vlaneseq
      %v459 = vshrl.u32 %v458, 7
      %v460 = vsub.s32 %v289, %v459
      %v461 = vrot.slane %v431, %v460
      %v462 = vlaneseq
      %v463 = vshrl.u32 %v462, 7
      %v464 = vsub.s32 %v289, %v463
      %v465 = vrot.slane %v434, %v464
      %v466 = vlaneseq
      %v467 = vshrl.u32 %v466, 7
      %v468 = vsub.s32 %v289, %v467
      %v469 = vrot.slane %v437, %v468
      %v470 = vsel %vm322, %v445, %v441
      %v471 = vsel %vm324, %v449, %v470
      %v472 = vsel %vm326, %v453, %v471
      %v473 = vsel %vm328, %v457, %v472
      %v474 = vsel %vm330, %v461, %v473
      %v475 = vsel %vm332, %v465, %v474
      %v476 = vsel %vm334, %v469, %v475
      %v478 = vsel %vm337, %v476, 0.0
      %479 = vadd.xlane.f32.xlu0 %v478
      %v480 = vpop.xlane.xlu0 %479
      %v482 = vlaneseq
      %v483 = vshrl.u32 %v482, 7
      %v484 = vsub.s32 0, %v483
      %v485 = vrot.slane %v480, %v484
      %v486 = vlaneseq
      %v487 = vshrl.u32 %v486, 7
      %v488 = vsub.s32 1, %v487
      %v489 = vrot.slane %v480, %v488
      %v490 = vlaneseq
      %v491 = vshrl.u32 %v490, 7
      %v492 = vsub.s32 2, %v491
      %v493 = vrot.slane %v480, %v492
      %v494 = vlaneseq
      %v495 = vshrl.u32 %v494, 7
      %v496 = vsub.s32 3, %v495
      %v497 = vrot.slane %v480, %v496
      %v498 = vlaneseq
      %v499 = vshrl.u32 %v498, 7
      %v500 = vsub.s32 4, %v499
      %v501 = vrot.slane %v480, %v500
      %v502 = vlaneseq
      %v503 = vshrl.u32 %v502, 7
      %v504 = vsub.s32 5, %v503
      %v505 = vrot.slane %v480, %v504
      %v506 = vlaneseq
      %v507 = vshrl.u32 %v506, 7
      %v508 = vsub.s32 6, %v507
      %v509 = vrot.slane %v480, %v508
      %v510 = vlaneseq
      %v511 = vshrl.u32 %v510, 7
      %v512 = vsub.s32 7, %v511
      %v513 = vrot.slane %v480, %v512
      %v522 = vrcp.pop %v485
      %v523 = vmul.f32 %v391, %v522
      %v524 = vrcp.pop %v489
      %v525 = vmul.f32 %v393, %v524
      %v526 = vrcp.pop %v493
      %v527 = vmul.f32 %v395, %v526
      %v528 = vrcp.pop %v497
      %v529 = vmul.f32 %v397, %v528
      %v530 = vrcp.pop %v501
      %v531 = vmul.f32 %v399, %v530
      %v532 = vrcp.pop %v505
      %v533 = vmul.f32 %v401, %v532
      %v534 = vrcp.pop %v509
      %v535 = vmul.f32 %v403, %v534
      %v536 = vrcp.pop %v513
      %v537 = vmul.f32 %v405, %v536
      %v538 = vmul.f32 %v523, %v222
      %v539 = vmul.f32 %v525, %v229
      %v540 = vmul.f32 %v527, %v236
      %v541 = vmul.f32 %v529, %v243
      %v542 = vmul.f32 %v531, %v250
      %v543 = vmul.f32 %v533, %v257
      %v544 = vmul.f32 %v535, %v264
      %v545 = vmul.f32 %v537, %v271
      %554 = vset.pattern.permute.xlu0 0
      %555 = vperm.xlu0 %554, %v538
      %v556 = vpop.permute.xlu0 %555
      %557 = vset.pattern.permute.xlu0 0
      %558 = vperm.xlu0 %557, %v539
      %v559 = vpop.permute.xlu0 %558
      %560 = vset.pattern.permute.xlu0 0
      %561 = vperm.xlu0 %560, %v540
      %v562 = vpop.permute.xlu0 %561
      %563 = vset.pattern.permute.xlu0 0
      %564 = vperm.xlu0 %563, %v541
      %v565 = vpop.permute.xlu0 %564
      %566 = vset.pattern.permute.xlu0 0
      %567 = vperm.xlu0 %566, %v542
      %v568 = vpop.permute.xlu0 %567
      %569 = vset.pattern.permute.xlu0 0
      %570 = vperm.xlu0 %569, %v543
      %v571 = vpop.permute.xlu0 %570
      %572 = vset.pattern.permute.xlu0 0
      %573 = vperm.xlu0 %572, %v544
      %v574 = vpop.permute.xlu0 %573
      %575 = vset.pattern.permute.xlu0 0
      %576 = vperm.xlu0 %575, %v545
      %v577 = vpop.permute.xlu0 %576
      %v578 = vlaneseq
      %v579 = vshrl.u32 %v578, 7
      %v580 = vsub.s32 %v289, %v579
      %v581 = vrot.slane %v556, %v580
      %v582 = vlaneseq
      %v583 = vshrl.u32 %v582, 7
      %v584 = vsub.s32 %v289, %v583
      %v585 = vrot.slane %v559, %v584
      %v586 = vlaneseq
      %v587 = vshrl.u32 %v586, 7
      %v588 = vsub.s32 %v289, %v587
      %v589 = vrot.slane %v562, %v588
      %v590 = vlaneseq
      %v591 = vshrl.u32 %v590, 7
      %v592 = vsub.s32 %v289, %v591
      %v593 = vrot.slane %v565, %v592
      %v594 = vlaneseq
      %v595 = vshrl.u32 %v594, 7
      %v596 = vsub.s32 %v289, %v595
      %v597 = vrot.slane %v568, %v596
      %v598 = vlaneseq
      %v599 = vshrl.u32 %v598, 7
      %v600 = vsub.s32 %v289, %v599
      %v601 = vrot.slane %v571, %v600
      %v602 = vlaneseq
      %v603 = vshrl.u32 %v602, 7
      %v604 = vsub.s32 %v289, %v603
      %v605 = vrot.slane %v574, %v604
      %v606 = vlaneseq
      %v607 = vshrl.u32 %v606, 7
      %v608 = vsub.s32 %v289, %v607
      %v609 = vrot.slane %v577, %v608
      %v610 = vsel %vm322, %v585, %v581
      %v611 = vsel %vm324, %v589, %v610
      %v612 = vsel %vm326, %v593, %v611
      %v613 = vsel %vm328, %v597, %v612
      %v614 = vsel %vm330, %v601, %v613
      %v615 = vsel %vm332, %v605, %v614
      %v616 = vsel %vm334, %v609, %v615
      %v618 = vsel %vm337, %v616, 0.0
      %619 = vadd.xlane.f32.xlu0 %v618
      %v620 = vpop.xlane.xlu0 %619
      %v621 = vrot.slane %v620, 4
      %v622 = vadd.f32 %v620, %v621
      %v623 = vrot.slane %v622, 2
      %v624 = vadd.f32 %v622, %v623
      %v625 = vrot.slane %v624, 1
      %v626 = vadd.f32 %v624, %v625
      %s627 = vtos %v626
      %v628 = vrcp.pop 8.0
      %s629 = vtos %v628
      %s630 = smul.f32 %s627, %s629
      %v631 = vsel %vm191, %v84, 0.0
      %v632 = vrot.slane %v631, 4
      %v633 = vadd.f32 %v631, %v632
      %v634 = vrot.slane %v633, 2
      %v635 = vadd.f32 %v633, %v634
      %v636 = vrot.slane %v635, 1
      %v637 = vadd.f32 %v635, %v636
      %v638 = vrcp.pop 4.0
      %v639 = vmul.f32 %v637, %v638
      %v640 = vsub.f32 %v84, %v639
      %v641 = vmul.f32 %v640, %v640
      %v642 = vsel %vm191, %v641, 0.0
      %643 = vadd.xlane.f32.xlu0 %v642
      %v644 = vpop.xlane.xlu0 %643
      %v645 = vrsqrt.pop %v644
      %v646 = vmul.f32 %v644, %v645
      %vm647 = vcmp.eq.f32.partialorder %v644, inf
      %v648 = vsel %vm647, %v644, %v646
      %vm649 = vcmp.eq.f32.partialorder %v644, 0.0
      %v650 = vand.u32 %v644, 2147483648
      %v651 = vsel %vm649, %v650, %v648
      %v652 = vsub.f32 0.0, %v644
      %vm653 = vcmask 1043456
      %v654 = vsel %vm653, %v652, -inf
      %v655 = vrot.slane %v654, 4
      %v656 = vmax.f32 %v654, %v655
      %v657 = vrot.slane %v656, 2
      %v658 = vmax.f32 %v656, %v657
      %v659 = vrot.slane %v658, 1
      %v660 = vmax.f32 %v658, %v659
      %v661 = vsub.f32 %v652, %v660
      %v662 = vmul.f32 %v661, 1.442695
      %v663 = vpow.pop %v662
      %v664 = vsel %vm653, %v663, 0.0
      %v665 = vrot.slane %v664, 4
      %v666 = vadd.f32 %v664, %v665
      %v667 = vrot.slane %v666, 2
      %v668 = vadd.f32 %v666, %v667
      %v669 = vrot.slane %v668, 1
      %v670 = vadd.f32 %v668, %v669
      %v671 = vrcp.pop %v670
      %v672 = vmul.f32 %v663, %v671
      %v673 = vmul.f32 %v672, %v651
      %vm674 = vcmask 3072
      %v675 = vsel %vm674, %v673, 0.0
      %676 = vadd.xlane.f32.xlu0 %v675
      %v677 = vpop.xlane.xlu0 %676
      %v678 = vrot.slane %v677, 4
      %v679 = vadd.f32 %v677, %v678
      %v680 = vrot.slane %v679, 2
      %v681 = vadd.f32 %v679, %v680
      %v682 = vrot.slane %v681, 1
      %v683 = vadd.f32 %v681, %v682
      %s684 = vtos %v683
      %s685 = scalar_lea.smem [#allocation3], 0
      %686 = sst [smem:[%s685]] %s630
      %s687 = scalar_lea.smem [#allocation3], 1
      %688 = sst [smem:[%s687]] %s684
    $region33: #{tpu_custom_call.1} parent=1 // pred_fallthru
      _
    %v689 = vld [vmem:[#allocation4] sm:$0xff]
    %v690 = vld [vmem:[#allocation4 + $0x8] sm:$0xff]
    %v691 = vld [vmem:[#allocation4 + $0x10] sm:$0xff]
    %v692 = vld [vmem:[#allocation4 + $0x18] sm:$0xff]
    %v693 = vld [vmem:[#allocation4 + $0x20] sm:$0xff]
    %v694 = vld [vmem:[#allocation4 + $0x28] sm:$0xff]
    %v695 = vld [vmem:[#allocation4 + $0x30] sm:$0xff]
    %v696 = vld [vmem:[#allocation4 + $0x38] sm:$0xff]
    %v697 = vld [vmem:[#allocation7] sm:$0xff]
    %v698 = vld [vmem:[#allocation7 + $0x8] sm:$0xff]
    %v699 = vld [vmem:[#allocation7 + $0x10] sm:$0xff]
    %v700 = vld [vmem:[#allocation7 + $0x18] sm:$0xff]
    %v701 = vld [vmem:[#allocation7 + $0x20] sm:$0xff]
    %v702 = vld [vmem:[#allocation7 + $0x28] sm:$0xff]
    %v703 = vld [vmem:[#allocation7 + $0x30] sm:$0xff]
    %v704 = vld [vmem:[#allocation7 + $0x38] sm:$0xff]
    %v705 = vsub.f32 %v689, %v697
    %v706 = vsub.f32 %v690, %v698
    %v707 = vsub.f32 %v691, %v699
    %v708 = vsub.f32 %v692, %v700
    %v709 = vsub.f32 %v693, %v701
    %v710 = vsub.f32 %v694, %v702
    %v711 = vsub.f32 %v695, %v703
    %v712 = vsub.f32 %v696, %v704
    %v713 = vmul.f32 %v705, %v705
    %v714 = vmul.f32 %v706, %v706
    %v715 = vmul.f32 %v707, %v707
    %v716 = vmul.f32 %v708, %v708
    %v717 = vmul.f32 %v709, %v709
    %v718 = vmul.f32 %v710, %v710
    %v719 = vmul.f32 %v711, %v711
    %v720 = vmul.f32 %v712, %v712
    %v721 = vld [vmem:[#allocation2] sm:$0xff]
    %v722 = vld [vmem:[#allocation2 + $0x8] sm:$0xff]
    %v723 = vld [vmem:[#allocation2 + $0x10] sm:$0xff]
    %v724 = vld [vmem:[#allocation2 + $0x18] sm:$0xff]
    %v725 = vld [vmem:[#allocation2 + $0x20] sm:$0xff]
    %v726 = vld [vmem:[#allocation2 + $0x28] sm:$0xff]
    %v727 = vld [vmem:[#allocation2 + $0x30] sm:$0xff]
    %v728 = vld [vmem:[#allocation2 + $0x38] sm:$0xff]
    %v729 = vadd.f32 %v721, %v713
    %v730 = vadd.f32 %v722, %v714
    %v731 = vadd.f32 %v723, %v715
    %v732 = vadd.f32 %v724, %v716
    %v733 = vadd.f32 %v725, %v717
    %v734 = vadd.f32 %v726, %v718
    %v735 = vadd.f32 %v727, %v719
    %v736 = vadd.f32 %v728, %v720
    %737 = vst [vmem:[#allocation2] sm:$0xff] %v729
    %738 = vst [vmem:[#allocation2 + $0x8] sm:$0xff] %v730
    %739 = vst [vmem:[#allocation2 + $0x10] sm:$0xff] %v731
    %740 = vst [vmem:[#allocation2 + $0x18] sm:$0xff] %v732
    %741 = vst [vmem:[#allocation2 + $0x20] sm:$0xff] %v733
    %742 = vst [vmem:[#allocation2 + $0x28] sm:$0xff] %v734
    %743 = vst [vmem:[#allocation2 + $0x30] sm:$0xff] %v735
    %744 = vst [vmem:[#allocation2 + $0x38] sm:$0xff] %v736
    // Predicated region
    $region34: #{tpu_custom_call.1} parent=1 // pred_check
      %p745 = pneg %p71
    $region35: #{tpu_custom_call.1} parent=1 // pred_check_branch
      %747 = sbr.rel (%p745) target = $region37
    $region36: #{tpu_custom_call.1} parent=1 // pred_region
      %v748 = vld [vmem:[#allocation2] sm:$0xff]
      %v749 = vld [vmem:[#allocation2 + $0x8] sm:$0xff]
      %v750 = vld [vmem:[#allocation2 + $0x10] sm:$0xff]
      %v751 = vld [vmem:[#allocation2 + $0x18] sm:$0xff]
      %v752 = vld [vmem:[#allocation2 + $0x20] sm:$0xff]
      %v753 = vld [vmem:[#allocation2 + $0x28] sm:$0xff]
      %v754 = vld [vmem:[#allocation2 + $0x30] sm:$0xff]
      %v755 = vld [vmem:[#allocation2 + $0x38] sm:$0xff]
      %v756 = vadd.f32 %v748, %v749
      %v757 = vadd.f32 %v756, %v750
      %v758 = vadd.f32 %v757, %v751
      %v759 = vadd.f32 %v758, %v752
      %v760 = vadd.f32 %v759, %v753
      %v761 = vadd.f32 %v760, %v754
      %v762 = vadd.f32 %v761, %v755
      %763 = vadd.xlane.f32.xlu0 %v762
      %v764 = vpop.xlane.xlu0 %763
      %v765 = vrot.slane %v764, 4
      %v766 = vadd.f32 %v764, %v765
      %v767 = vrot.slane %v766, 2
      %v768 = vadd.f32 %v766, %v767
      %v769 = vrot.slane %v768, 1
      %v770 = vadd.f32 %v768, %v769
      %s771 = vtos %v770
      %v772 = vlaneseq
      %v773 = vshrl.u32 %v772, 7
      %v774 = vmul.u32 %v773, 128
      %v775 = vlaneseq
      %v776 = vand.u32 %v775, 127
      %v777 = vadd.s32 %v774, %v776
      %vm778 = vcmp.eq.s32.totalorder %v777, 0
      %vm779 = vcmp.eq.s32.totalorder %v777, 1
      %s780 = sld [smem:[#allocation3]]
      %vm781 = vcmp.eq.s32.totalorder %v777, 2
      %s782 = sld [smem:[#allocation3 + $0x1]]
      %v783 = vstv %s782
      %v784 = vsel %vm781, %v783, 0.0
      %v785 = vstv %s780
      %v786 = vsel %vm779, %v785, %v784
      %v787 = vstv %s771
      %v788 = vsel %vm778, %v787, %v786
      %789 = vst [vmem:[#allocation10] sm:$0xff] %v788
    $region37: #{tpu_custom_call.1} parent=1 // pred_fallthru
      _
    // Predicated region
    $region38: #{tpu_custom_call.1} parent=1 // pred_check
      _
    $region39: #{tpu_custom_call.1} parent=1 // pred_check_branch
      %791 = sbr.rel (0) target = $region41
    $region40: #{tpu_custom_call.1} parent=1 // pred_region
      %s793 = ssub.s32 128, 128
      %794 = vsyncadd [#allocation6], %s793
      %s796 = sshll.u32 [#allocation10], 4
      %s797 = int_to_ptr.vmem [resolvable:$true] %s796
      %799 = dma.vmem_to_hbm [thread:$0]  %s797, 128, %s4, [#allocation6]
    $region41: #{tpu_custom_call.1} parent=1 // pred_fallthru
      _
    // Predicated region
    $region42: #{tpu_custom_call.1} parent=1 // pred_check
      _
    $region43: #{tpu_custom_call.1} parent=1 // pred_check_branch
      %801 = sbr.rel (0) target = $region45
    $region44: #{tpu_custom_call.1} parent=1 // pred_region
      %802 = dma.done [#allocation6], 128
    $region45: #{tpu_custom_call.1} parent=1 // pred_fallthru
      _
    %803 = vsyncpa [#allocation5], 1
    %804 = vsyncpa [#allocation8], 1
    %805 = vsyncpa [#allocation6], 1

</llo_original>
